<compile_context>
chip_gen: v7x
topology: tpu7x:2x2x1
jax: 0.10.0
libtpu: 0.0.40
codegen_flags: <defaults>
</compile_context>

<pallas_src>
import functools

import jax
import jax.numpy as jnp
from jax.experimental import pallas as pl
from jax.experimental.pallas import tpu as pltpu


def _round_up(n, m):
    return ((n + m - 1) // m) * m


def _pad_axis0(a, rows):
    if a.shape[0] == rows:
        return a
    pad = [(0, rows - a.shape[0])] + [(0, 0)] * (a.ndim - 1)
    return jnp.pad(a, pad)


def _vmem_limit_bytes(resident_bytes):
    # Leave headroom for double-buffered blocks; clamp to what every TPU
    # generation can actually provide (v7x physical VMEM is 64 MiB).
    return int(min(max(2 * resident_bytes + (2 << 20), 16 << 20), 64 << 20))


# ----------------------------------------------------------------------------
# Kernels
# ----------------------------------------------------------------------------

def _rnn_step_concat_kernel(xh_ref, w_ref, b_ref, out_ref, *, tn, h_pad):
    # Single fused MXU dot: (x|h) @ [Wh_cols | Wo_cols] for this lane tile.
    acc = jnp.dot(xh_ref[...], w_ref[...], preferred_element_type=jnp.float32)
    acc = acc + b_ref[...]
    # ReLU only on the hidden section.  The boundary (h_pad) is tile-aligned,
    # so the mask is all-ones / all-zeros per tile (cheap VPU filler next to MXU).
    col = pl.program_id(1) * tn + jax.lax.broadcasted_iota(jnp.int32, acc.shape, 1)
    acc = jnp.where(col < h_pad, jnp.maximum(acc, 0.0), acc)
    out_ref[...] = acc.astype(out_ref.dtype)


def _rnn_step_split_kernel(x_ref, h_ref, wx_ref, wh_ref, b_ref, out_ref, *, tn, h_pad):
    # combined @ W.T == x @ Wx + h @ Wh : the concat is never materialized.
    acc = jnp.dot(x_ref[...], wx_ref[...], preferred_element_type=jnp.float32)
    acc = acc + jnp.dot(h_ref[...], wh_ref[...], preferred_element_type=jnp.float32)
    acc = acc + b_ref[...]
    col = pl.program_id(1) * tn + jax.lax.broadcasted_iota(jnp.int32, acc.shape, 1)
    acc = jnp.where(col < h_pad, jnp.maximum(acc, 0.0), acc)
    out_ref[...] = acc.astype(out_ref.dtype)


def _rnn_seq_kernel(x_ref, h0_ref, wx_ref, wh_ref, b_ref, y_ref, hT_ref, h_scr,
                    *, h_pad, param_dtype):
    # grid = (batch_tiles, T); weights/bias have constant index maps (resident),
    # the hidden state lives in VMEM scratch and is carried across t.
    t = pl.program_id(1)

    @pl.when(t == 0)
    def _():
        h_scr[...] = h0_ref[...]

    h = h_scr[...].astype(param_dtype)
    acc = jnp.dot(x_ref[0], wx_ref[...], preferred_element_type=jnp.float32)
    acc = acc + jnp.dot(h, wh_ref[...], preferred_element_type=jnp.float32)
    acc = acc + b_ref[...]

    # Lane-aligned split: columns [0, h_pad) -> new hidden (ReLU), rest -> output.
    new_h = jnp.maximum(acc[:, :h_pad], 0.0)
    h_scr[...] = new_h
    y_ref[0] = acc[:, h_pad:].astype(y_ref.dtype)
    hT_ref[...] = new_h.astype(hT_ref.dtype)   # same block every t; last write wins


# ----------------------------------------------------------------------------
# Builder: fuse / transpose / pad torch-layout weights ONCE.
# ----------------------------------------------------------------------------

def make_rnn(params, input_size, hidden_size, output_size, *,
             param_dtype=jnp.bfloat16, tn_max=512, concat_k=None):
    """Returns (step, run_sequence).

    step(x, hidden_state)  -> (output, new_hidden)        # one pallas_call / step
    run_sequence(xs, h0)   -> (outputs[T], final_hidden)  # ONE pallas_call, grid=(B_tiles, T)

    params (torch nn.Linear layout):
      w_h: (hidden, input+hidden)   b_h: (hidden,)
      w_o: (output, input+hidden)   b_o: (output,)
    """
    w_h = jnp.asarray(params["w_h"], jnp.float32)
    b_h = jnp.asarray(params["b_h"], jnp.float32)
    w_o = jnp.asarray(params["w_o"], jnp.float32)
    b_o = jnp.asarray(params["b_o"], jnp.float32)

    k_total = input_size + hidden_size
    if concat_k is None:
        # One fused dot only pays off while each K chunk is a padded MXU pass.
        concat_k = (input_size < 128) and (hidden_size < 128)

    # Lane tile and 128-aligned section widths on the fused N axis.
    tn = min(tn_max, _round_up(max(hidden_size, output_size), 128))
    h_pad = _round_up(hidden_size, tn)      # hidden section  [0, h_pad)
    o_pad = _round_up(output_size, tn)      # output section  [h_pad, n_pad)
    n_pad = h_pad + o_pad
    grid_n = n_pad // tn
    psize = jnp.dtype(param_dtype).itemsize

    # Fused weight (K, N): hidden projection in columns [0, hidden),
    # output projection in [h_pad, h_pad+output).  All padding is exact zero.
    w_all = jnp.zeros((n_pad, k_total), jnp.float32)
    w_all = w_all.at[:hidden_size, :].set(w_h)
    w_all = w_all.at[h_pad:h_pad + output_size, :].set(w_o)

    w_full = jnp.transpose(w_all).astype(param_dtype)                # (K_total, n_pad)
    wx = jnp.transpose(w_all[:, :input_size]).astype(param_dtype)    # (input,   n_pad)
    wh = jnp.transpose(w_all[:, input_size:]).astype(param_dtype)    # (hidden,  n_pad)
    wh_seq = jnp.zeros((h_pad, n_pad), param_dtype).at[:hidden_size].set(wh)

    b = jnp.zeros((1, n_pad), jnp.float32)                           # f32 bias
    b = b.at[0, :hidden_size].set(b_h)
    b = b.at[0, h_pad:h_pad + output_size].set(b_o)

    step_kernel = functools.partial(
        _rnn_step_concat_kernel if concat_k else _rnn_step_split_kernel,
        tn=tn, h_pad=h_pad)
    seq_kernel = functools.partial(_rnn_seq_kernel, h_pad=h_pad, param_dtype=param_dtype)

    def _batch_tiling(batch):
        b8 = _round_up(max(batch, 1), 8)     # sublane padding
        tb = min(b8, 128)                    # batch tile (parallel across TCs)
        b_pad = _round_up(b8, tb)
        return b_pad, tb, b_pad // tb

    # ------------------------------------------------------------------ step
    def step(x, hidden_state):
        batch = x.shape[0]
        b_pad, tb, grid_b = _batch_tiling(batch)

        xp = _pad_axis0(x.astype(param_dtype), b_pad)
        hp = _pad_axis0(hidden_state.astype(param_dtype), b_pad)

        if concat_k:
            inputs = (jnp.concatenate([xp, hp], axis=1), w_full, b)
            in_specs = [
                pl.BlockSpec((tb, k_total), lambda i, j: (i, 0)),
                pl.BlockSpec((k_total, tn), lambda i, j: (0, j)),
                pl.BlockSpec((1, tn), lambda i, j: (0, j)),
            ]
            resident = psize * (b_pad * k_total + k_total * n_pad)
        else:
            inputs = (xp, hp, wx, wh, b)
            in_specs = [
                pl.BlockSpec((tb, input_size), lambda i, j: (i, 0)),
                pl.BlockSpec((tb, hidden_size), lambda i, j: (i, 0)),
                pl.BlockSpec((input_size, tn), lambda i, j: (0, j)),
                pl.BlockSpec((hidden_size, tn), lambda i, j: (0, j)),
                pl.BlockSpec((1, tn), lambda i, j: (0, j)),
            ]
            resident = psize * (b_pad * k_total + k_total * n_pad)
        resident += 4 * (n_pad + b_pad * n_pad)
        flops = 2 * b_pad * k_total * n_pad

        fused = pl.pallas_call(
            step_kernel,
            out_shape=jax.ShapeDtypeStruct((b_pad, n_pad), jnp.float32),
            grid=(grid_b, grid_n),
            in_specs=in_specs,
            out_specs=pl.BlockSpec((tb, tn), lambda i, j: (i, j)),
            compiler_params=pltpu.CompilerParams(
                dimension_semantics=("parallel", "parallel"),
                vmem_limit_bytes=_vmem_limit_bytes(resident)),
            cost_estimate=pl.CostEstimate(
                flops=int(flops), transcendentals=0, bytes_accessed=int(resident)),
        )(*inputs)

        # Lane-aligned (128-multiple) slices back into (output, new_hidden).
        new_hidden = fused[:batch, :hidden_size]
        output = fused[:batch, h_pad:h_pad + output_size]
        return output, new_hidden

    # --------------------------------------------------------------- sequence
    def run_sequence(xs, h0):
        seq_len, batch, _ = xs.shape
        b_pad, tb, grid_b = _batch_tiling(batch)

        xs_p = jnp.pad(xs, ((0, 0), (0, b_pad - batch), (0, 0))).astype(param_dtype)
        h0_p = jnp.zeros((b_pad, h_pad), jnp.float32).at[:batch, :hidden_size].set(h0)

        resident = (psize * (input_size * n_pad + h_pad * n_pad)   # resident weights
                    + 4 * n_pad                                    # bias
                    + 2 * psize * tb * input_size                  # x double-buffer
                    + 2 * 4 * tb * o_pad                           # y double-buffer
                    + 3 * 4 * tb * h_pad)                          # h0 / hT / scratch
        flops = 2 * seq_len * b_pad * (input_size + h_pad) * n_pad
        bytes_accessed = (psize * (xs_p.size + input_size * n_pad + h_pad * n_pad)
                          + 4 * (n_pad + seq_len * b_pad * o_pad + 2 * b_pad * h_pad))

        y, hT = pl.pallas_call(
            seq_kernel,
            out_shape=(jax.ShapeDtypeStruct((seq_len, b_pad, o_pad), jnp.float32),
                       jax.ShapeDtypeStruct((b_pad, h_pad), jnp.float32)),
            grid=(grid_b, seq_len),
            in_specs=[
                pl.BlockSpec((1, tb, input_size), lambda i, t: (t, i, 0)),  # x_t stream
                pl.BlockSpec((tb, h_pad), lambda i, t: (i, 0)),             # h0
                pl.BlockSpec((input_size, n_pad), lambda i, t: (0, 0)),     # Wx resident
                pl.BlockSpec((h_pad, n_pad), lambda i, t: (0, 0)),          # Wh resident
                pl.BlockSpec((1, n_pad), lambda i, t: (0, 0)),              # bias resident
            ],
            out_specs=(
                pl.BlockSpec((1, tb, o_pad), lambda i, t: (t, i, 0)),       # y_t stream
                pl.BlockSpec((tb, h_pad), lambda i, t: (i, 0)),             # final hidden
            ),
            scratch_shapes=[pltpu.VMEM((tb, h_pad), jnp.float32)],          # carried h
            compiler_params=pltpu.CompilerParams(
                dimension_semantics=("parallel", "arbitrary"),
                vmem_limit_bytes=_vmem_limit_bytes(resident)),
            cost_estimate=pl.CostEstimate(
                flops=int(flops), transcendentals=0, bytes_accessed=int(bytes_accessed)),
        )(xs_p, h0_p, wx, wh_seq, b)

        outputs = y[:, :batch, :output_size]
        final_hidden = hT[:batch, :hidden_size]
        return outputs, final_hidden

    return step, run_sequence


def init_params(key, input_size, hidden_size, output_size):
    """Deterministic init mimicking nn.Linear defaults (uniform +/- 1/sqrt(fan_in))."""
    k1, k2, k3, k4 = jax.random.split(key, 4)
    fan_in = input_size + hidden_size
    bound = 1.0 / jnp.sqrt(fan_in)
    return {
        "w_h": jax.random.uniform(k1, (hidden_size, fan_in), jnp.float32, -bound, bound),
        "b_h": jax.random.uniform(k2, (hidden_size,), jnp.float32, -bound, bound),
        "w_o": jax.random.uniform(k3, (output_size, fan_in), jnp.float32, -bound, bound),
        "b_o": jax.random.uniform(k4, (output_size,), jnp.float32, -bound, bound),
    }


if __name__ == "__main__":
    key = jax.random.PRNGKey(0)
    k_x, k_h, k_p, k_s = jax.random.split(key, 4)

    batch = 2
    input_size = 16
    hidden_size = 32
    output_size = 8
    seq_len = 8
    param_dtype = jnp.bfloat16

    x = jax.random.normal(k_x, (batch, input_size), jnp.float32)
    hidden_state = jax.random.normal(k_h, (batch, hidden_size), jnp.float32)
    xs = jax.random.normal(k_s, (seq_len, batch, input_size), jnp.float32)
    params = init_params(k_p, input_size, hidden_size, output_size)

    # Pure-JAX reference with matched precision (bf16 operands, f32 accumulation).
    def ref_step(x_t, h_t):
        comb = jnp.concatenate([x_t, h_t], axis=1).astype(param_dtype)
        pre_h = jnp.dot(comb, params["w_h"].astype(param_dtype).T,
                        preferred_element_type=jnp.float32) + params["b_h"]
        pre_o = jnp.dot(comb, params["w_o"].astype(param_dtype).T,
                        preferred_element_type=jnp.float32) + params["b_o"]
        return pre_o, jnp.maximum(pre_h, 0.0)

    # Build once (weight fusion / transposes / casts happen here, not per call).
    step, run_sequence = make_rnn(params, input_size, hidden_size, output_size,
                                  param_dtype=param_dtype)
    step = jax.jit(step)
    run_sequence = jax.jit(run_sequence)

    # --- single step (fused one-dot path, since input/hidden < 128) ---
    out, new_hidden = step(x, hidden_state)
    jax.block_until_ready((out, new_hidden))
    ref_out, ref_hidden = ref_step(x, hidden_state)
    assert out.shape == (batch, output_size)
    assert new_hidden.shape == (batch, hidden_size)
    assert jnp.allclose(out, ref_out, atol=5e-3, rtol=5e-3), "step output mismatch"
    assert jnp.allclose(new_hidden, ref_hidden, atol=5e-3, rtol=5e-3), "step hidden mismatch"

    # --- single step, two-dot (no-concat) path, same math ---
    step_split, _ = make_rnn(params, input_size, hidden_size, output_size,
                             param_dtype=param_dtype, concat_k=False)
    out2, new_hidden2 = jax.jit(step_split)(x, hidden_state)
    jax.block_until_ready((out2, new_hidden2))
    assert jnp.allclose(out2, ref_out, atol=5e-3, rtol=5e-3), "split-path output mismatch"
    assert jnp.allclose(new_hidden2, ref_hidden, atol=5e-3, rtol=5e-3), "split-path hidden mismatch"

    # --- whole sequence in ONE pallas_call: grid=(batch_tiles, T), resident weights ---
    ys, hT = run_sequence(xs, hidden_state)
    jax.block_until_ready((ys, hT))

    h_ref = hidden_state
    ys_ref = []
    for t in range(seq_len):
        y_t, h_ref = ref_step(xs[t], h_ref)
        ys_ref.append(y_t)
    ys_ref = jnp.stack(ys_ref)

    assert ys.shape == (seq_len, batch, output_size)
    assert hT.shape == (batch, hidden_size)
    assert jnp.allclose(ys, ys_ref, atol=1e-2, rtol=1e-2), "sequence outputs mismatch"
    assert jnp.allclose(hT, h_ref, atol=1e-2, rtol=1e-2), "sequence hidden mismatch"

    print("KERNEL_OK")
</pallas_src>

<mosaic_0001>
module attributes {stable_mosaic.version = 11 : i64} {
  func.func @_rnn_step_concat_kernel(%arg0: i32, %arg1: i32, %arg2: memref<8x48xbf16, #tpu.memory_space<vmem>>, %arg3: memref<48x128xbf16, #tpu.memory_space<vmem>>, %arg4: memref<1x128xf32, #tpu.memory_space<vmem>>, %arg5: memref<8x128xf32, #tpu.memory_space<vmem>>) attributes {dimension_semantics = [#tpu.dimension_semantics<parallel>, #tpu.dimension_semantics<parallel>], iteration_bounds = array<i64: 1, 2>, scalar_prefetch = 0 : i64, scratch_operands = 0 : i64, tpu.core_type = #tpu.core_type<tc>, window_params = [{transform_indices = @transform_0, window_bounds = array<i64: 8, 48>}, {transform_indices = @transform_1, window_bounds = array<i64: 48, 128>}, {transform_indices = @transform_2, window_bounds = array<i64: 1, 128>}, {transform_indices = @transform_3, window_bounds = array<i64: 8, 128>}]} {
    %c0 = arith.constant 0 : index
    %c0_0 = arith.constant 0 : index
    %0 = vector.load %arg2[%c0, %c0_0] : memref<8x48xbf16, #tpu.memory_space<vmem>>, vector<8x48xbf16>
    %c0_1 = arith.constant 0 : index
    %c0_2 = arith.constant 0 : index
    %1 = vector.load %arg3[%c0_1, %c0_2] : memref<48x128xbf16, #tpu.memory_space<vmem>>, vector<48x128xbf16>
    %cst = arith.constant dense<0.000000e+00> : vector<8x128xf32>
    %2 = tpu.matmul %0, %1, %cst {dimension_numbers = #tpu.dot_dimension_numbers<[1], [0], [0], [1], [0, 0, 1, 1], [], []>} : vector<8x48xbf16>, vector<48x128xbf16>, vector<8x128xf32> -> vector<8x128xf32>
    %c0_3 = arith.constant 0 : index
    %c0_4 = arith.constant 0 : index
    %3 = vector.load %arg4[%c0_3, %c0_4] : memref<1x128xf32, #tpu.memory_space<vmem>>, vector<1x128xf32>
    %4 = vector.broadcast %3 : vector<1x128xf32> to vector<8x128xf32>
    %5 = arith.addf %2, %4 : vector<8x128xf32>
    %c128_i32 = arith.constant 128 : i32
    %6 = arith.muli %arg1, %c128_i32 : i32
    %7 = tpu.iota {dimensions = array<i32: 1>} : vector<8x128xi32>
    %8 = vector.broadcast %6 : i32 to vector<8x128xi32>
    %9 = arith.addi %8, %7 : vector<8x128xi32>
    %c128_i32_5 = arith.constant 128 : i32
    %10 = vector.broadcast %c128_i32_5 : i32 to vector<8x128xi32>
    %11 = arith.cmpi slt, %9, %10 : vector<8x128xi32>
    %cst_6 = arith.constant 0.000000e+00 : f32
    %12 = vector.broadcast %cst_6 : f32 to vector<8x128xf32>
    %13 = arith.maximumf %5, %12 : vector<8x128xf32>
    %14 = arith.select %11, %13, %5 : vector<8x128xi1>, vector<8x128xf32>
    %c0_7 = arith.constant 0 : index
    %c0_8 = arith.constant 0 : index
    %15 = vector.load %arg5[%c0_7, %c0_8] : memref<8x128xf32, #tpu.memory_space<vmem>>, vector<8x128xf32>
    tpu.vector_store %arg5[%c0_7, %c0_8], %14 {strides = array<i32>} : memref<8x128xf32, #tpu.memory_space<vmem>>, vector<8x128xf32>,
    return
  }
  func.func @transform_0(%arg0: i32, %arg1: i32) -> (i32, i32) {
    %c0_i32 = arith.constant 0 : i32
    %c0_i32_0 = arith.constant 0 : i32
    return %arg0, %c0_i32 : i32, i32
  }
  func.func @transform_1(%arg0: i32, %arg1: i32) -> (i32, i32) {
    %c0_i32 = arith.constant 0 : i32
    %c0_i32_0 = arith.constant 0 : i32
    return %c0_i32, %arg1 : i32, i32
  }
  func.func @transform_2(%arg0: i32, %arg1: i32) -> (i32, i32) {
    %c0_i32 = arith.constant 0 : i32
    %c0_i32_0 = arith.constant 0 : i32
    return %c0_i32, %arg1 : i32, i32
  }
  func.func @transform_3(%arg0: i32, %arg1: i32) -> (i32, i32) {
    %c0_i32 = arith.constant 0 : i32
    return %arg0, %arg1 : i32, i32
  }
}

</mosaic_0001>

<llo_original>
// kernel: step.1
$region0: #{step.1}
  #allocation0 [shape = 'u32[]', space=smem, size = 0x4, offset = 0x4, fixed_abs, tag = 'smem constant byte address 0x4 - core index']
  #allocation1 [shape = 'u32[144,128]{1,0:T(1,128)}', space=vmem, size = 0x12000, scoped, tag = 'internal scratch']
  %s0 = inlined_call_operand.vmem [shape: bf16[8,48], index: 0, kind: input, shape index: {}]
  %s1 = inlined_call_operand.vmem [shape: bf16[48,256], index: 1, kind: input, shape index: {}]
  %s2 = inlined_call_operand.vmem [shape: f32[1,256], index: 2, kind: input, shape index: {}]
  %s3 = inlined_call_operand.vmem [shape: f32[8,256], index: 3, kind: output, shape index: {}]
  %s4 = sld [smem:[#allocation0]]
  $region86: #{step.1} parent=0
    _
  %s6 = ssub.s32 1, %s4
  %s7 = scalar_select 0, %s6, %s4
  $region1: #{step.1} parent=0
    #allocation2 [shape = 'u8[24576]{0}', space=vmem, size = 0x6000, scoped, tag = 'input window, operand 1']
    loop: start=0, step=1, limit=4
    $region2: #{step.1} parent=1 // loop_pre_header
      _
    $region3: #{step.1} parent=1 // loop_header
      %s9 = sphi 0, %s13
      %p10 = scmp.ge.s32.totalorder %s9, 4
      %s16 = sphi 0, %s28
      %s17 = sphi 0, %s24
      %s18 = sphi 0, %s16
      %s19 = sphi 0, %s17
      %s20 = sphi 0, %s18
      %s21 = sphi 0, %s19
      %s31 = sphi 0, %s33
      %s34 = sphi 0, %s31
      %s35 = sphi 0, %s34
      %s51 = sphi 0, %s35
      %s57 = sphi 0, %s59
      %s60 = sphi 0, %s57
      %s61 = sphi 0, %s60
      %s77 = sphi 0, %s61
      %s83 = sphi 0, %s85
      %s86 = sphi 0, %s83
      %s87 = sphi 0, %s86
      %s103 = sphi 0, %s87
      %s111 = sphi 0, %s113
      %s114 = sphi 0, %s111
      %s115 = sphi 0, %s114
      %s131 = sphi 0, %s115
    $region4: #{step.1} parent=1 // loop_header_branch
      %12 = sbr.rel (%p10) target = $region8
    $region5: #{step.1} parent=1 // loop_body
      %s14 = ssub.s32 %s9, 1
      %s15 = ssub.s32 %s9, 2
      %s22 = sadd.s32 1, %s17
      %p23 = scmp.ge.s32.totalorder %s22, 2
      %s24 = scalar_select %p23, 0, %s22
      %s25 = sadd.s32 1, %s16
      %s26 = scalar_select %p23, %s25, %s16
      %p27 = scmp.ge.s32.totalorder %s26, 1
      %s28 = scalar_select %p27, 0, %s26
      %s29 = ssub.s32 %s16, %s28
      %p30 = scmp.eq.s32.totalorder %s29, 0
      %s32 = sadd.s32 %s31, 1
      %s33 = scalar_select %p30, %s31, %s32
      %p36 = pneg %p30
      %p37 = scmp.eq.s32.totalorder %s9, 1
      %p38 = por %p36, %p37
      %p39 = scmp.ne.s32.totalorder %s31, %s34
      %p40 = scmp.eq.s32.totalorder %s9, 0
      %p41 = por %p39, %p40
      %p42 = scmp.ne.s32.totalorder %s31, %s34
      %p43 = scmp.eq.s32.totalorder %s14, 1
      %p44 = por %p42, %p43
      %p45 = scmp.ne.s32.totalorder %s34, %s35
      %p46 = scmp.eq.s32.totalorder %s14, 0
      %p47 = por %p45, %p46
      %p48 = scmp.ne.s32.totalorder %s34, %s35
      %p49 = scmp.eq.s32.totalorder %s15, 1
      %p50 = por %p48, %p49
      %p52 = scmp.ne.s32.totalorder %s35, %s51
      %p53 = scmp.eq.s32.totalorder %s15, 0
      %p54 = por %p52, %p53
      %s55 = ssub.s32 %s17, %s24
      %p56 = scmp.eq.s32.totalorder %s55, 0
      %s58 = sadd.s32 %s57, 1
      %s59 = scalar_select %p56, %s57, %s58
      %p62 = pneg %p56
      %p63 = scmp.eq.s32.totalorder %s9, 1
      %p64 = por %p62, %p63
      %p65 = scmp.ne.s32.totalorder %s57, %s60
      %p66 = scmp.eq.s32.totalorder %s9, 0
      %p67 = por %p65, %p66
      %p68 = scmp.ne.s32.totalorder %s57, %s60
      %p69 = scmp.eq.s32.totalorder %s14, 1
      %p70 = por %p68, %p69
      %p71 = scmp.ne.s32.totalorder %s60, %s61
      %p72 = scmp.eq.s32.totalorder %s14, 0
      %p73 = por %p71, %p72
      %p74 = scmp.ne.s32.totalorder %s60, %s61
      %p75 = scmp.eq.s32.totalorder %s15, 1
      %p76 = por %p74, %p75
      %p78 = scmp.ne.s32.totalorder %s61, %s77
      %p79 = scmp.eq.s32.totalorder %s15, 0
      %p80 = por %p78, %p79
      %s81 = ssub.s32 %s17, %s24
      %p82 = scmp.eq.s32.totalorder %s81, 0
      %s84 = sadd.s32 %s83, 1
      %s85 = scalar_select %p82, %s83, %s84
      %p88 = pneg %p82
      %p89 = scmp.eq.s32.totalorder %s9, 1
      %p90 = por %p88, %p89
      %p91 = scmp.ne.s32.totalorder %s83, %s86
      %p92 = scmp.eq.s32.totalorder %s9, 0
      %p93 = por %p91, %p92
      %p94 = scmp.ne.s32.totalorder %s83, %s86
      %p95 = scmp.eq.s32.totalorder %s14, 1
      %p96 = por %p94, %p95
      %p97 = scmp.ne.s32.totalorder %s86, %s87
      %p98 = scmp.eq.s32.totalorder %s14, 0
      %p99 = por %p97, %p98
      %p100 = scmp.ne.s32.totalorder %s86, %s87
      %p101 = scmp.eq.s32.totalorder %s15, 1
      %p102 = por %p100, %p101
      %p104 = scmp.ne.s32.totalorder %s87, %s103
      %p105 = scmp.eq.s32.totalorder %s15, 0
      %p106 = por %p104, %p105
      %s107 = ssub.s32 %s16, %s28
      %s108 = ssub.s32 %s17, %s24
      %s109 = sor.u32 %s107, %s108
      %p110 = scmp.eq.s32.totalorder %s109, 0
      %s112 = sadd.s32 %s111, 1
      %s113 = scalar_select %p110, %s111, %s112
      %p116 = pneg %p110
      %p117 = scmp.eq.s32.totalorder %s9, 1
      %p118 = por %p116, %p117
      %p119 = scmp.ne.s32.totalorder %s111, %s114
      %p120 = scmp.eq.s32.totalorder %s9, 0
      %p121 = por %p119, %p120
      %p122 = scmp.ne.s32.totalorder %s111, %s114
      %p123 = scmp.eq.s32.totalorder %s14, 1
      %p124 = por %p122, %p123
      %p125 = scmp.ne.s32.totalorder %s114, %s115
      %p126 = scmp.eq.s32.totalorder %s14, 0
      %p127 = por %p125, %p126
      %p128 = scmp.ne.s32.totalorder %s114, %s115
      %p129 = scmp.eq.s32.totalorder %s15, 1
      %p130 = por %p128, %p129
      %p132 = scmp.ne.s32.totalorder %s115, %s131
      %p133 = scmp.eq.s32.totalorder %s15, 0
      %p134 = por %p132, %p133
      %p135 = scmp.le.s32.totalorder 1, %s9
      %p136 = scmp.lt.s32.totalorder %s9, 3
      %p137 = pnand %p135, %p136
      %p138 = pneg %p137
      // Predicated region
      $region9: #{step.1} parent=5 // pred_check
        _
      $region10: #{step.1} parent=5 // pred_check_branch
        %140 = sbr.rel (%p137) target = $region12
      $region11: #{step.1} parent=5 // pred_region
        %s141 = ssub.s32 %s9, 1
        // Predicated region
        $region13: #{step.1} parent=11 // pred_check
          %p142 = pneg %p47
        $region14: #{step.1} parent=11 // pred_check_branch
          %144 = sbr.rel (%p142) target = $region16
        $region15: #{step.1} parent=11 // pred_region
          %p145 = scmp.lt.s32.totalorder %s18, 0
          %s146 = scalar_select %p145, %s18, 0
          %s147 = smul.addr %s146, 4
          %s148 = scalar_lea.vmem %s0, %s147
        $region16: #{step.1} parent=11 // pred_fallthru
          _
      $region12: #{step.1} parent=5 // pred_fallthru
        _
      %p149 = scmp.lt.s32.totalorder %s9, 2
      // Predicated region
      $region17: #{step.1} parent=5 // pred_check
        %p150 = pneg %p149
      $region18: #{step.1} parent=5 // pred_check_branch
        %152 = sbr.rel (%p150) target = $region20
      $region19: #{step.1} parent=5 // pred_region
        // Predicated region
        $region21: #{step.1} parent=19 // pred_check
          %p153 = pneg %p67
        $region22: #{step.1} parent=19 // pred_check_branch
          %155 = sbr.rel (%p153) target = $region24
        $region23: #{step.1} parent=19 // pred_region
          %s156 = sand.u32 %s57, 1
          %s157 = sand.u32 %s57, 1
          %s158 = smul.addr %s157, 24
          %s159 = scalar_lea.vmem [#allocation2], %s158
          %s160 = smul.addr %s17, 4
          %s161 = scalar_lea.vmem %s1, %s160
          // Predicated region
          $region25: #{step.1} parent=23 // pred_check
            _
          $region26: #{step.1} parent=23 // pred_check_branch
            %163 = sbr.rel (0) target = $region28
          $region27: #{step.1} parent=23 // pred_region
            // Predicated region
            $region29: #{step.1} parent=27 // pred_check
              _
            $region30: #{step.1} parent=27 // pred_check_branch
              %165 = sbr.rel target = $region32
            $region31: #{step.1} parent=27 // pred_region
              // Predicated region
              $region44: #{step.1} parent=31 // pred_check
                _
              $region45: #{step.1} parent=31 // pred_check_branch
                %190 = sbr.rel (0) target = $region47
              $region46: #{step.1} parent=31 // pred_region
                loop: start=0, step=1, limit=1
                $region48: #{step.1} parent=46 // loop_pre_header
                  _
                $region49: #{step.1} parent=46 // loop_header
                  %s192 = sphi 0, %s196
                  %p193 = scmp.ge.s32.totalorder %s192, 1
                  %s197 = sphi %s161, %s161
                  %s198 = sphi %s159, %s159
                $region50: #{step.1} parent=46 // loop_header_branch
                  %195 = sbr.rel (%p193) target = $region54
                $region51: #{step.1} parent=46 // loop_body
                  _
                $region52: #{step.1} parent=46 // loop_footer
                  %s196 = sadd.s32 1, %s192
                $region53: #{step.1} parent=46 // loop_footer_branch
                  %191 = sbr.rel target = $region49
                $region54: #{step.1} parent=46 // loop_exit
                  _
                loop: start=0, step=1, limit=1
                $region55: #{step.1} parent=46 // loop_pre_header
                  _
                $region56: #{step.1} parent=46 // loop_header
                  %s201 = sphi 0, %s205
                  %p202 = scmp.ge.s32.totalorder %s201, 1
                  %s206 = sphi %s161, %s161
                  %s207 = sphi %s159, %s159
                $region57: #{step.1} parent=46 // loop_header_branch
                  %204 = sbr.rel (%p202) target = $region61
                $region58: #{step.1} parent=46 // loop_body
                  %v208 = vld [vmem:[%s206] sm:$0xf]
                  %209 = vst [vmem:[%s207] sm:$0xf] %v208
                  %v210 = vld [vmem:[%s206 + $0x8] sm:$0xf]
                  %211 = vst [vmem:[%s207 + $0x4] sm:$0xf] %v210
                  %v212 = vld [vmem:[%s206 + $0x10] sm:$0xf]
                  %213 = vst [vmem:[%s207 + $0x8] sm:$0xf] %v212
                  %v214 = vld [vmem:[%s206 + $0x18] sm:$0xf]
                  %215 = vst [vmem:[%s207 + $0xc] sm:$0xf] %v214
                  %v216 = vld [vmem:[%s206 + $0x20] sm:$0xf]
                  %217 = vst [vmem:[%s207 + $0x10] sm:$0xf] %v216
                  %v218 = vld [vmem:[%s206 + $0x28] sm:$0xf]
                  %219 = vst [vmem:[%s207 + $0x14] sm:$0xf] %v218
                $region59: #{step.1} parent=46 // loop_footer
                  %s205 = sadd.s32 1, %s201
                $region60: #{step.1} parent=46 // loop_footer_branch
                  %200 = sbr.rel target = $region56
                $region61: #{step.1} parent=46 // loop_exit
                  _
              $region47: #{step.1} parent=31 // pred_fallthru
                _
            $region32: #{step.1} parent=27 // pred_fallthru
              _
            // Predicated region
            $region33: #{step.1} parent=27 // pred_check
              _
            $region34: #{step.1} parent=27 // pred_check_branch
              %167 = sbr.rel (0) target = $region36
            $region35: #{step.1} parent=27 // pred_region
              loop: start=0, step=1, limit=1
              $region37: #{step.1} parent=35 // loop_pre_header
                _
              $region38: #{step.1} parent=35 // loop_header
                %s170 = sphi 0, %s174
                %p171 = scmp.ge.s32.totalorder %s170, 1
                %s175 = sphi %s161, %s161
                %s176 = sphi %s159, %s159
              $region39: #{step.1} parent=35 // loop_header_branch
                %173 = sbr.rel (%p171) target = $region43
              $region40: #{step.1} parent=35 // loop_body
                %v177 = vld [vmem:[%s175] sm:$0xf]
                %178 = vst [vmem:[%s176] sm:$0xf] %v177
                %v179 = vld [vmem:[%s175 + $0x8] sm:$0xf]
                %180 = vst [vmem:[%s176 + $0x4] sm:$0xf] %v179
                %v181 = vld [vmem:[%s175 + $0x10] sm:$0xf]
                %182 = vst [vmem:[%s176 + $0x8] sm:$0xf] %v181
                %v183 = vld [vmem:[%s175 + $0x18] sm:$0xf]
                %184 = vst [vmem:[%s176 + $0xc] sm:$0xf] %v183
                %v185 = vld [vmem:[%s175 + $0x20] sm:$0xf]
                %186 = vst [vmem:[%s176 + $0x10] sm:$0xf] %v185
                %v187 = vld [vmem:[%s175 + $0x28] sm:$0xf]
                %188 = vst [vmem:[%s176 + $0x14] sm:$0xf] %v187
              $region41: #{step.1} parent=35 // loop_footer
                %s174 = sadd.s32 1, %s170
              $region42: #{step.1} parent=35 // loop_footer_branch
                %169 = sbr.rel target = $region38
              $region43: #{step.1} parent=35 // loop_exit
                _
            $region36: #{step.1} parent=27 // pred_fallthru
              _
          $region28: #{step.1} parent=23 // pred_fallthru
            _
          %220 = vnop
        $region24: #{step.1} parent=19 // pred_fallthru
          _
        // Predicated region
        $region62: #{step.1} parent=19 // pred_check
          %p221 = pneg %p93
        $region63: #{step.1} parent=19 // pred_check_branch
          %223 = sbr.rel (%p221) target = $region65
        $region64: #{step.1} parent=19 // pred_region
          %p224 = scmp.lt.s32.totalorder %s17, 1
          %s225 = scalar_select %p224, %s17, 1
          %s226 = scalar_lea.vmem %s2, %s225
        $region65: #{step.1} parent=19 // pred_fallthru
          _
      $region20: #{step.1} parent=5 // pred_fallthru
        _
      %p227 = scmp.le.s32.totalorder 1, %s9
      %p228 = scmp.lt.s32.totalorder %s9, 3
      %p229 = pnand %p227, %p228
      %p230 = pneg %p229
      // Predicated region
      $region66: #{step.1} parent=5 // pred_check
        _
      $region67: #{step.1} parent=5 // pred_check_branch
        %232 = sbr.rel (%p229) target = $region69
      $region68: #{step.1} parent=5 // pred_region
        %s233 = ssub.s32 %s9, 1
        %s234 = sand.u32 %s60, 1
        %s235 = sand.u32 %s60, 1
        %s236 = smul.addr %s235, 24
        %s237 = scalar_lea.vmem [#allocation2], %s236
        // Predicated region
        $region70: #{step.1} parent=68 // pred_check
          %p238 = pneg %p73
        $region71: #{step.1} parent=68 // pred_check_branch
          %240 = sbr.rel (%p238) target = $region73
        $region72: #{step.1} parent=68 // pred_region
          _
        $region73: #{step.1} parent=68 // pred_fallthru
          _
        %p241 = scmp.lt.s32.totalorder %s18, 0
        %s242 = scalar_select %p241, %s18, 0
        %s243 = smul.addr %s242, 4
        %s244 = scalar_lea.vmem %s0, %s243
        %p245 = pneg %p47
        %p246 = pneg %p44
        %s247 = sand.u32 %s60, 1
        %s248 = sand.u32 %s60, 1
        %s249 = smul.addr %s248, 24
        %s250 = scalar_lea.vmem [#allocation2], %s249
        %p251 = pneg %p73
        %p252 = pneg %p70
        %p253 = scmp.lt.s32.totalorder %s19, 1
        %s254 = scalar_select %p253, %s19, 1
        %s255 = scalar_lea.vmem %s2, %s254
        %p256 = pneg %p99
        %p257 = pneg %p96
        %p258 = pneg %p127
        %p259 = pneg %p124
        %p260 = scmp.lt.s32.totalorder %s18, 0
        %s261 = scalar_select %p260, %s18, 0
        %p262 = scmp.lt.s32.totalorder %s19, 1
        %s263 = scalar_select %p262, %s19, 1
        %s264 = smul.addr %s261, 2
        %s265 = sadd.s32 %s263, %s264
        %s266 = smul.addr %s265, 8
        %s267 = scalar_lea.vmem %s3, %s266
        %p268 = scmp.lt.s32.totalorder %s18, 0
        %s269 = scalar_select %p268, %s18, 0
        %s270 = smul.addr %s269, 4
        %s271 = scalar_lea.vmem %s0, %s270
        %p272 = scmp.lt.s32.totalorder %s19, 1
        %s273 = scalar_select %p272, %s19, 1
        %s274 = scalar_lea.vmem %s2, %s273
        %p275 = scmp.lt.s32.totalorder %s18, 0
        %s276 = scalar_select %p275, %s18, 0
        %p277 = scmp.lt.s32.totalorder %s19, 1
        %s278 = scalar_select %p277, %s19, 1
        %s279 = smul.addr %s276, 2
        %s280 = sadd.s32 %s278, %s279
        %s281 = smul.addr %s280, 8
        %s282 = scalar_lea.vmem %s3, %s281
        %v284 = vld [vmem:[%s271] sm:$0xf]
        %v285 = vld [vmem:[%s237] sm:$0xf]
        %v286 = vld [vmem:[%s237 + $0x4] sm:$0xf]
        %v287 = vld [vmem:[%s237 + $0x8] sm:$0xf]
        %v288 = vld [vmem:[%s237 + $0xc] sm:$0xf]
        %v289 = vld [vmem:[%s237 + $0x10] sm:$0xf]
        %v290 = vld [vmem:[%s237 + $0x14] sm:$0xf]
        %v291 = vld [vmem:[%s274] sm:$0x1]
        %v293 = vlaneseq
        %v294 = vshrl.u32 %v293, 7
        %v295 = vsub.s32 0, %v294
        %v296 = vrot.slane %v291, %v295
        %v304 = vunpack.c.l.b16 %v285
        %v305 = vunpack.c.l.b16 %v286
        %v306 = vunpack.c.l.b16 %v287
        %v307 = vunpack.c.l.b16 %v288
        %v308 = vunpack.c.l.b16 %v289
        %v309 = vunpack.c.l.b16 %v290
        %v310 = vpack.c.b16 %v305, %v304
        %v311 = vpack.c.b16 %v307, %v306
        %v312 = vpack.c.b16 %v309, %v308
        %vm316 = vcmask 392192
        %v318 = vsel %vm316, %v284, 0
        %320 = vmatprep.subr.bf16.mxu0 0
        %321 = vmatpush1.bf16.msra.mxu0 %v310
        %322 = vmatprep.subr.bf16.mxu0 0
        %323 = vmatpush1.bf16.msra.mxu0 %v311
        %324 = vmatprep.subr.bf16.mxu0 0
        %325 = vmatpush1.bf16.msra.mxu0 %v312
        %326 = vmatprep.subr.bf16.mxu0 0
        %327 = vmatpush1.bf16.msra.mxu0 0
        %328 = vmatprep.subr.bf16.mxu0 0
        %329 = vmatpush1.bf16.msra.mxu0 0
        %330 = vmatprep.subr.bf16.mxu0 0
        %331 = vmatpush1.bf16.msra.mxu0 0
        %332 = vmatprep.subr.bf16.mxu0 0
        %333 = vmatpush1.bf16.msra.mxu0 0
        %334 = vmatprep.subr.bf16.mxu0 0
        %335 = vmatpush1.bf16.msra.mxu0 0
        %336 = vmatprep.subr.bf16.mxu0 0
        %337 = vmatpush1.bf16.msra.mxu0 0
        %338 = vmatprep.subr.bf16.mxu0 0
        %339 = vmatpush1.bf16.msra.mxu0 0
        %340 = vmatprep.subr.bf16.mxu0 0
        %341 = vmatpush1.bf16.msra.mxu0 0
        %342 = vmatprep.subr.bf16.mxu0 0
        %343 = vmatpush1.bf16.msra.mxu0 0
        %344 = vmatprep.subr.bf16.mxu0 0
        %345 = vmatpush1.bf16.msra.mxu0 0
        %346 = vmatprep.subr.bf16.mxu0 0
        %347 = vmatpush1.bf16.msra.mxu0 0
        %348 = vmatprep.subr.bf16.mxu0 0
        %349 = vmatpush1.bf16.msra.mxu0 0
        %350 = vmatprep.subr.bf16.mxu0 0
        %351 = vmatpush1.bf16.msra.mxu0 0
        %352 = vmatprep.mubr.bf16.mxu0 0
        %353 = vmatmul.mubr.bf16.gmra.mrb[0].mxu0 %v318
        %v354 = vpop.f32.mrb[0].mxu0
        %v355 = vadd.f32 %v296, %v354
        %v356 = vpop.f32.mrb[0].mxu0
        %v357 = vpop.f32.mrb[0].mxu0
        %v358 = vpop.f32.mrb[0].mxu0
        %359 = vdwg.mxu0
        %s360 = smul.u32 %s19, 128
        %v361 = vlaneseq
        %v362 = vand.u32 %v361, 127
        %v363 = vstv %s360
        %v364 = vadd.s32 %v363, %v362
        %vm365 = vcmp.lt.s32.totalorder %v364, 128
        %v366 = vmax.f32 %v355, 0.0
        %v367 = vsel %vm365, %v366, %v355
        %368 = vst [vmem:[%s282] sm:$0xff] %v367
        %p369 = scmp.lt.s32.totalorder %s18, 0
        %s370 = scalar_select %p369, %s18, 0
        %p371 = scmp.lt.s32.totalorder %s19, 1
        %s372 = scalar_select %p371, %s19, 1
        %s373 = smul.addr %s370, 2
        %s374 = sadd.s32 %s372, %s373
        %s375 = smul.addr %s374, 8
        %s376 = scalar_lea.vmem %s3, %s375
        // Predicated region
        $region74: #{step.1} parent=68 // pred_check
          %p377 = pneg %p124
        $region75: #{step.1} parent=68 // pred_check_branch
          %379 = sbr.rel (%p377) target = $region77
        $region76: #{step.1} parent=68 // pred_region
          _
        $region77: #{step.1} parent=68 // pred_fallthru
          _
      $region69: #{step.1} parent=5 // pred_fallthru
        _
      %p380 = scmp.le.s32.totalorder 2, %s9
      // Predicated region
      $region78: #{step.1} parent=5 // pred_check
        %p381 = pneg %p380
      $region79: #{step.1} parent=5 // pred_check_branch
        %383 = sbr.rel (%p381) target = $region81
      $region80: #{step.1} parent=5 // pred_region
        %s384 = ssub.s32 %s9, 2
        // Predicated region
        $region82: #{step.1} parent=80 // pred_check
          %p385 = pneg %p130
        $region83: #{step.1} parent=80 // pred_check_branch
          %387 = sbr.rel (%p385) target = $region85
        $region84: #{step.1} parent=80 // pred_region
          %p388 = scmp.lt.s32.totalorder %s20, 0
          %s389 = scalar_select %p388, %s20, 0
          %p390 = scmp.lt.s32.totalorder %s21, 1
          %s391 = scalar_select %p390, %s21, 1
          %s392 = smul.addr %s389, 2
          %s393 = sadd.s32 %s391, %s392
          %s394 = smul.addr %s393, 8
          %s395 = scalar_lea.vmem %s3, %s394
        $region85: #{step.1} parent=80 // pred_fallthru
          _
      $region81: #{step.1} parent=5 // pred_fallthru
        _
    $region6: #{step.1} parent=1 // loop_footer
      %s13 = sadd.s32 1, %s9
    $region7: #{step.1} parent=1 // loop_footer_branch
      %8 = sbr.rel target = $region3
    $region8: #{step.1} parent=1 // loop_exit
      _

</llo_original>
